<compile_context>
chip_gen: v6e
topology: v6e:2x2x1
jax: 0.10.0
libtpu: 0.0.40
codegen_flags: <defaults>
</compile_context>

<pallas_src>
import functools

import jax
import jax.numpy as jnp
from jax.experimental import pallas as pl
from jax.experimental.pallas import tpu as pltpu

LANE = 128      # vreg lane width (last dim)
SUBLANE = 8     # f32 sublane width (second-to-last dim)


def _round_up(n, m):
    return ((n + m - 1) // m) * m


def _pad_to(x, target_shape):
    """Zero-pad `x` on the high side of each axis up to `target_shape`."""
    pads = [(0, t - s) for s, t in zip(x.shape, target_shape)]
    if all(p == (0, 0) for p in pads):
        return x
    return jnp.pad(x, pads)


def _orthogonal(key, rows, cols, dtype=jnp.float32):
    """Deterministic orthogonal init (QR of a Gaussian), like torch orthogonal_."""
    big = max(rows, cols)
    a = jax.random.normal(key, (big, big), dtype=jnp.float32)
    q, r = jnp.linalg.qr(a)
    d = jnp.diag(r)
    # Sign correction (avoid sign(0) == 0 zeroing a column).
    s = jnp.where(d >= 0, 1.0, -1.0)
    q = q * s[None, :]
    return q[:rows, :cols].astype(dtype)


def _mlp_kernel(x_ref, w1_ref, w2_ref, w3_ref, b_ref, o_ref):
    # Fused MLP on one batch tile: three MXU matmuls (f32 accumulation) plus
    # VPU/EUP tanh.  Weights/biases are grid-invariant (constant index_maps)
    # and therefore stay resident in VMEM while x/o tiles pipeline.
    x = x_ref[...]
    b1 = b_ref[0:1, :]   # (1, d_h) -> broadcasts over rows
    b2 = b_ref[1:2, :]
    h = jnp.tanh(
        jnp.dot(x, w1_ref[...], preferred_element_type=jnp.float32) + b1
    )
    h = jnp.tanh(
        jnp.dot(h, w2_ref[...], preferred_element_type=jnp.float32) + b2
    )
    o_ref[...] = jnp.dot(
        h, w3_ref[...], preferred_element_type=jnp.float32
    ).astype(o_ref.dtype)


@functools.partial(jax.jit, static_argnames=("block_m",))
def mlp_forward(x, w1, b1, w2, b2, w3, *, block_m=256):
    batch, input_dim = x.shape
    hidden_dim = w1.shape[1]
    output_dim = w3.shape[1]

    # Lane-dense (>=128) padded feature dims.
    d_in = _round_up(input_dim, LANE)
    d_h = _round_up(hidden_dim, LANE)
    d_out = _round_up(output_dim, LANE)

    # Batch tile: multiple of the f32 sublane width, capped at block_m.
    tm = min(block_m, _round_up(batch, SUBLANE))
    m_p = _round_up(batch, tm)
    grid = (pl.cdiv(m_p, tm),)

    x_p = _pad_to(x, (m_p, d_in))
    w1_p = _pad_to(w1, (d_in, d_h))
    w2_p = _pad_to(w2, (d_h, d_h))
    w3_p = _pad_to(w3, (d_h, d_out))
    b_p = _pad_to(jnp.stack([b1.reshape(-1), b2.reshape(-1)], axis=0), (2, d_h))

    # Advisory cost hint for XLA scheduling around the custom call.
    flops = 2 * m_p * (d_in * d_h + d_h * d_h + d_h * d_out)
    bytes_accessed = 4 * (
        m_p * d_in + d_in * d_h + d_h * d_h + d_h * d_out + 2 * d_h + m_p * d_out
    )
    cost = pl.CostEstimate(
        flops=flops, transcendentals=2 * m_p * d_h, bytes_accessed=bytes_accessed
    )

    out = pl.pallas_call(
        _mlp_kernel,
        out_shape=jax.ShapeDtypeStruct((m_p, d_out), x.dtype),
        grid=grid,
        in_specs=[
            pl.BlockSpec((tm, d_in), lambda i: (i, 0)),     # activations: pipelined
            pl.BlockSpec((d_in, d_h), lambda i: (0, 0)),    # w1: VMEM-resident
            pl.BlockSpec((d_h, d_h), lambda i: (0, 0)),     # w2: VMEM-resident
            pl.BlockSpec((d_h, d_out), lambda i: (0, 0)),   # w3: VMEM-resident
            pl.BlockSpec((2, d_h), lambda i: (0, 0)),       # packed biases
        ],
        out_specs=pl.BlockSpec((tm, d_out), lambda i: (i, 0)),  # lane-dense output
        compiler_params=pltpu.CompilerParams(
            # 'parallel' lets v7x shard the batch axis over both TensorCores;
            # harmless on single-TC v5e/v6e.
            dimension_semantics=("parallel",),
        ),
        cost_estimate=cost,
    )(x_p, w1_p, w2_p, w3_p, b_p)

    return out[:batch, :output_dim]


def init_mlp_params(key, input_dim, hidden_dim, output_dim, dtype=jnp.float32):
    k1, k2, k3, kb1, kb2 = jax.random.split(key, 5)
    # torch stores Linear weight as (out, in); we store (in, out) = W.T
    w1 = _orthogonal(k1, hidden_dim, input_dim, dtype).T
    w2 = _orthogonal(k2, hidden_dim, hidden_dim, dtype).T
    w3 = _orthogonal(k3, output_dim, hidden_dim, dtype).T
    # torch Linear bias default: U(-1/sqrt(fan_in), 1/sqrt(fan_in))
    b1 = jax.random.uniform(
        kb1, (1, hidden_dim), dtype,
        minval=-1.0 / jnp.sqrt(input_dim), maxval=1.0 / jnp.sqrt(input_dim))
    b2 = jax.random.uniform(
        kb2, (1, hidden_dim), dtype,
        minval=-1.0 / jnp.sqrt(hidden_dim), maxval=1.0 / jnp.sqrt(hidden_dim))
    return w1, b1, w2, b2, w3


if __name__ == "__main__":
    key = jax.random.PRNGKey(0)
    k_x, k_p = jax.random.split(key)

    batch, input_dim, hidden_dim, output_dim = 64, 16, 32, 8

    x = jax.random.normal(k_x, (batch, input_dim), dtype=jnp.float32)
    w1, b1, w2, b2, w3 = init_mlp_params(k_p, input_dim, hidden_dim, output_dim)

    # block_m=32 -> grid=(2,) so the batch-tiled / pipelined path is exercised.
    out = mlp_forward(x, w1, b1, w2, b2, w3, block_m=32)
    jax.block_until_ready(out)

    # Reference check in plain JAX (same math as the PyTorch forward).
    ref = jnp.tanh(x @ w1 + b1)
    ref = jnp.tanh(ref @ w2 + b2)
    ref = ref @ w3
    assert out.shape == (batch, output_dim)
    assert jnp.allclose(out, ref, atol=1e-5, rtol=1e-5)

    print("KERNEL_OK")
</pallas_src>

<mosaic_0001>
module attributes {stable_mosaic.version = 11 : i64} {
  func.func @_mlp_kernel(%arg0: i32, %arg1: memref<32x128xf32, #tpu.memory_space<vmem>>, %arg2: memref<128x128xf32, #tpu.memory_space<vmem>>, %arg3: memref<128x128xf32, #tpu.memory_space<vmem>>, %arg4: memref<128x128xf32, #tpu.memory_space<vmem>>, %arg5: memref<2x128xf32, #tpu.memory_space<vmem>>, %arg6: memref<32x128xf32, #tpu.memory_space<vmem>>) attributes {dimension_semantics = [#tpu.dimension_semantics<parallel>], iteration_bounds = array<i64: 2>, scalar_prefetch = 0 : i64, scratch_operands = 0 : i64, tpu.core_type = #tpu.core_type<tc>, window_params = [{transform_indices = @transform_0, window_bounds = array<i64: 32, 128>}, {pipeline_mode = #tpu.pipeline_mode<synchronous>, transform_indices = @transform_1, window_bounds = array<i64: 128, 128>}, {pipeline_mode = #tpu.pipeline_mode<synchronous>, transform_indices = @transform_2, window_bounds = array<i64: 128, 128>}, {pipeline_mode = #tpu.pipeline_mode<synchronous>, transform_indices = @transform_3, window_bounds = array<i64: 128, 128>}, {pipeline_mode = #tpu.pipeline_mode<synchronous>, transform_indices = @transform_4, window_bounds = array<i64: 2, 128>}, {transform_indices = @transform_5, window_bounds = array<i64: 32, 128>}]} {
    %c0 = arith.constant 0 : index
    %c0_0 = arith.constant 0 : index
    %0 = vector.load %arg1[%c0, %c0_0] : memref<32x128xf32, #tpu.memory_space<vmem>>, vector<32x128xf32>
    %c0_1 = arith.constant 0 : index
    %c0_2 = arith.constant 0 : index
    %1 = vector.load %arg5[%c0_1, %c0_2] : memref<2x128xf32, #tpu.memory_space<vmem>>, vector<1x128xf32>
    %c1 = arith.constant 1 : index
    %c0_3 = arith.constant 0 : index
    %2 = vector.load %arg5[%c1, %c0_3] : memref<2x128xf32, #tpu.memory_space<vmem>>, vector<1x128xf32>
    %c0_4 = arith.constant 0 : index
    %c0_5 = arith.constant 0 : index
    %3 = vector.load %arg2[%c0_4, %c0_5] : memref<128x128xf32, #tpu.memory_space<vmem>>, vector<128x128xf32>
    %cst = arith.constant dense<0.000000e+00> : vector<32x128xf32>
    %4 = tpu.matmul %0, %3, %cst {dimension_numbers = #tpu.dot_dimension_numbers<[1], [0], [0], [1], [0, 0, 1, 1], [], []>} : vector<32x128xf32>, vector<128x128xf32>, vector<32x128xf32> -> vector<32x128xf32>
    %5 = vector.broadcast %1 : vector<1x128xf32> to vector<32x128xf32>
    %6 = arith.addf %4, %5 : vector<32x128xf32>
    %7 = math.tanh %6 : vector<32x128xf32>
    %c0_6 = arith.constant 0 : index
    %c0_7 = arith.constant 0 : index
    %8 = vector.load %arg3[%c0_6, %c0_7] : memref<128x128xf32, #tpu.memory_space<vmem>>, vector<128x128xf32>
    %cst_8 = arith.constant dense<0.000000e+00> : vector<32x128xf32>
    %9 = tpu.matmul %7, %8, %cst_8 {dimension_numbers = #tpu.dot_dimension_numbers<[1], [0], [0], [1], [0, 0, 1, 1], [], []>} : vector<32x128xf32>, vector<128x128xf32>, vector<32x128xf32> -> vector<32x128xf32>
    %10 = vector.broadcast %2 : vector<1x128xf32> to vector<32x128xf32>
    %11 = arith.addf %9, %10 : vector<32x128xf32>
    %12 = math.tanh %11 : vector<32x128xf32>
    %c0_9 = arith.constant 0 : index
    %c0_10 = arith.constant 0 : index
    %13 = vector.load %arg4[%c0_9, %c0_10] : memref<128x128xf32, #tpu.memory_space<vmem>>, vector<128x128xf32>
    %cst_11 = arith.constant dense<0.000000e+00> : vector<32x128xf32>
    %14 = tpu.matmul %12, %13, %cst_11 {dimension_numbers = #tpu.dot_dimension_numbers<[1], [0], [0], [1], [0, 0, 1, 1], [], []>} : vector<32x128xf32>, vector<128x128xf32>, vector<32x128xf32> -> vector<32x128xf32>
    %c0_12 = arith.constant 0 : index
    %c0_13 = arith.constant 0 : index
    %15 = vector.load %arg6[%c0_12, %c0_13] : memref<32x128xf32, #tpu.memory_space<vmem>>, vector<32x128xf32>
    tpu.vector_store %arg6[%c0_12, %c0_13], %14 {strides = array<i32>} : memref<32x128xf32, #tpu.memory_space<vmem>>, vector<32x128xf32>,
    return
  }
  func.func @transform_0(%arg0: i32) -> (i32, i32) {
    %c0_i32 = arith.constant 0 : i32
    %c0_i32_0 = arith.constant 0 : i32
    return %arg0, %c0_i32 : i32, i32
  }
  func.func @transform_1(%arg0: i32) -> (i32, i32) {
    %c0_i32 = arith.constant 0 : i32
    %c0_i32_0 = arith.constant 0 : i32
    %c0_i32_1 = arith.constant 0 : i32
    return %c0_i32, %c0_i32_0 : i32, i32
  }
  func.func @transform_2(%arg0: i32) -> (i32, i32) {
    %c0_i32 = arith.constant 0 : i32
    %c0_i32_0 = arith.constant 0 : i32
    %c0_i32_1 = arith.constant 0 : i32
    return %c0_i32, %c0_i32_0 : i32, i32
  }
  func.func @transform_3(%arg0: i32) -> (i32, i32) {
    %c0_i32 = arith.constant 0 : i32
    %c0_i32_0 = arith.constant 0 : i32
    %c0_i32_1 = arith.constant 0 : i32
    return %c0_i32, %c0_i32_0 : i32, i32
  }
  func.func @transform_4(%arg0: i32) -> (i32, i32) {
    %c0_i32 = arith.constant 0 : i32
    %c0_i32_0 = arith.constant 0 : i32
    %c0_i32_1 = arith.constant 0 : i32
    return %c0_i32, %c0_i32_0 : i32, i32
  }
  func.func @transform_5(%arg0: i32) -> (i32, i32) {
    %c0_i32 = arith.constant 0 : i32
    %c0_i32_0 = arith.constant 0 : i32
    return %arg0, %c0_i32 : i32, i32
  }
}

</mosaic_0001>

<llo_original>
// kernel: mlp_forward.1
$region0: #{mlp_forward.1}
  #allocation0 [shape = 'u32[]', space=smem, size = 0x4, offset = 0x4, fixed_abs, tag = 'smem constant byte address 0x4 - core index']
  #allocation1 [shape = 'u32[144,128]{1,0:T(1,128)}', space=vmem, size = 0x12000, scoped, tag = 'internal scratch']
  %s0 = inlined_call_operand.vmem [shape: f32[64,128], index: 0, kind: input, shape index: {}]
  %s1 = inlined_call_operand.vmem [shape: f32[128,128], index: 1, kind: input, shape index: {}]
  %s2 = inlined_call_operand.vmem [shape: f32[128,128], index: 2, kind: input, shape index: {}]
  %s3 = inlined_call_operand.vmem [shape: f32[128,128], index: 3, kind: input, shape index: {}]
  %s4 = inlined_call_operand.vmem [shape: f32[2,128], index: 4, kind: input, shape index: {}]
  %s5 = inlined_call_operand.vmem [shape: f32[64,128], index: 5, kind: output, shape index: {}]
  %s6 = sld [smem:[#allocation0]]
  $region53: #{mlp_forward.1} parent=0
    _
  %s8 = ssub.s32 1, %s6
  %s9 = scalar_select 0, %s8, %s6
  loop: start=0, step=1, limit=4
  $region2: #{mlp_forward.1} parent=0 // loop_pre_header
    _
  $region3: #{mlp_forward.1} parent=0 // loop_header
    %s11 = sphi 0, %s15
    %p12 = scmp.ge.s32.totalorder %s11, 4
    %s21 = sphi 0, %s23
    %s24 = sphi 0, %s21
    %s25 = sphi 0, %s24
    %s41 = sphi 0, %s25
    %s45 = sphi 0, %s45
    %s47 = sphi 0, %s45
    %s48 = sphi 0, %s47
    %s62 = sphi 0, %s48
    %s66 = sphi 0, %s66
    %s68 = sphi 0, %s66
    %s69 = sphi 0, %s68
    %s83 = sphi 0, %s69
    %s87 = sphi 0, %s87
    %s89 = sphi 0, %s87
    %s90 = sphi 0, %s89
    %s104 = sphi 0, %s90
    %s108 = sphi 0, %s108
    %s110 = sphi 0, %s108
    %s111 = sphi 0, %s110
    %s125 = sphi 0, %s111
    %s131 = sphi 0, %s133
    %s134 = sphi 0, %s131
    %s135 = sphi 0, %s134
    %s151 = sphi 0, %s135
  $region4: #{mlp_forward.1} parent=0 // loop_header_branch
    %14 = sbr.rel (%p12) target = $region8
  $region5: #{mlp_forward.1} parent=0 // loop_body
    %s16 = ssub.s32 %s11, 1
    %s17 = ssub.s32 %s11, 2
    %s18 = sadd.s32 %s11, 1
    %s19 = ssub.s32 %s11, %s18
    %p20 = scmp.eq.s32.totalorder %s19, 0
    %s22 = sadd.s32 %s21, 1
    %s23 = scalar_select %p20, %s21, %s22
    %p26 = pneg %p20
    %p27 = scmp.eq.s32.totalorder %s11, 1
    %p28 = por %p26, %p27
    %p29 = scmp.ne.s32.totalorder %s21, %s24
    %p30 = scmp.eq.s32.totalorder %s11, 0
    %p31 = por %p29, %p30
    %p32 = scmp.ne.s32.totalorder %s21, %s24
    %p33 = scmp.eq.s32.totalorder %s16, 1
    %p34 = por %p32, %p33
    %p35 = scmp.ne.s32.totalorder %s24, %s25
    %p36 = scmp.eq.s32.totalorder %s16, 0
    %p37 = por %p35, %p36
    %p38 = scmp.ne.s32.totalorder %s24, %s25
    %p39 = scmp.eq.s32.totalorder %s17, 1
    %p40 = por %p38, %p39
    %p42 = scmp.ne.s32.totalorder %s25, %s41
    %p43 = scmp.eq.s32.totalorder %s17, 0
    %p44 = por %p42, %p43
    %s46 = sadd.s32 %s45, 1
    %p49 = scmp.eq.s32.totalorder %s11, 1
    %p50 = scmp.ne.s32.totalorder %s45, %s47
    %p51 = scmp.eq.s32.totalorder %s11, 0
    %p52 = por %p50, %p51
    %p53 = scmp.ne.s32.totalorder %s45, %s47
    %p54 = scmp.eq.s32.totalorder %s16, 1
    %p55 = por %p53, %p54
    %p56 = scmp.ne.s32.totalorder %s47, %s48
    %p57 = scmp.eq.s32.totalorder %s16, 0
    %p58 = por %p56, %p57
    %p59 = scmp.ne.s32.totalorder %s47, %s48
    %p60 = scmp.eq.s32.totalorder %s17, 1
    %p61 = por %p59, %p60
    %p63 = scmp.ne.s32.totalorder %s48, %s62
    %p64 = scmp.eq.s32.totalorder %s17, 0
    %p65 = por %p63, %p64
    %s67 = sadd.s32 %s66, 1
    %p70 = scmp.eq.s32.totalorder %s11, 1
    %p71 = scmp.ne.s32.totalorder %s66, %s68
    %p72 = scmp.eq.s32.totalorder %s11, 0
    %p73 = por %p71, %p72
    %p74 = scmp.ne.s32.totalorder %s66, %s68
    %p75 = scmp.eq.s32.totalorder %s16, 1
    %p76 = por %p74, %p75
    %p77 = scmp.ne.s32.totalorder %s68, %s69
    %p78 = scmp.eq.s32.totalorder %s16, 0
    %p79 = por %p77, %p78
    %p80 = scmp.ne.s32.totalorder %s68, %s69
    %p81 = scmp.eq.s32.totalorder %s17, 1
    %p82 = por %p80, %p81
    %p84 = scmp.ne.s32.totalorder %s69, %s83
    %p85 = scmp.eq.s32.totalorder %s17, 0
    %p86 = por %p84, %p85
    %s88 = sadd.s32 %s87, 1
    %p91 = scmp.eq.s32.totalorder %s11, 1
    %p92 = scmp.ne.s32.totalorder %s87, %s89
    %p93 = scmp.eq.s32.totalorder %s11, 0
    %p94 = por %p92, %p93
    %p95 = scmp.ne.s32.totalorder %s87, %s89
    %p96 = scmp.eq.s32.totalorder %s16, 1
    %p97 = por %p95, %p96
    %p98 = scmp.ne.s32.totalorder %s89, %s90
    %p99 = scmp.eq.s32.totalorder %s16, 0
    %p100 = por %p98, %p99
    %p101 = scmp.ne.s32.totalorder %s89, %s90
    %p102 = scmp.eq.s32.totalorder %s17, 1
    %p103 = por %p101, %p102
    %p105 = scmp.ne.s32.totalorder %s90, %s104
    %p106 = scmp.eq.s32.totalorder %s17, 0
    %p107 = por %p105, %p106
    %s109 = sadd.s32 %s108, 1
    %p112 = scmp.eq.s32.totalorder %s11, 1
    %p113 = scmp.ne.s32.totalorder %s108, %s110
    %p114 = scmp.eq.s32.totalorder %s11, 0
    %p115 = por %p113, %p114
    %p116 = scmp.ne.s32.totalorder %s108, %s110
    %p117 = scmp.eq.s32.totalorder %s16, 1
    %p118 = por %p116, %p117
    %p119 = scmp.ne.s32.totalorder %s110, %s111
    %p120 = scmp.eq.s32.totalorder %s16, 0
    %p121 = por %p119, %p120
    %p122 = scmp.ne.s32.totalorder %s110, %s111
    %p123 = scmp.eq.s32.totalorder %s17, 1
    %p124 = por %p122, %p123
    %p126 = scmp.ne.s32.totalorder %s111, %s125
    %p127 = scmp.eq.s32.totalorder %s17, 0
    %p128 = por %p126, %p127
    %s129 = ssub.s32 %s11, %s18
    %p130 = scmp.eq.s32.totalorder %s129, 0
    %s132 = sadd.s32 %s131, 1
    %s133 = scalar_select %p130, %s131, %s132
    %p136 = pneg %p130
    %p137 = scmp.eq.s32.totalorder %s11, 1
    %p138 = por %p136, %p137
    %p139 = scmp.ne.s32.totalorder %s131, %s134
    %p140 = scmp.eq.s32.totalorder %s11, 0
    %p141 = por %p139, %p140
    %p142 = scmp.ne.s32.totalorder %s131, %s134
    %p143 = scmp.eq.s32.totalorder %s16, 1
    %p144 = por %p142, %p143
    %p145 = scmp.ne.s32.totalorder %s134, %s135
    %p146 = scmp.eq.s32.totalorder %s16, 0
    %p147 = por %p145, %p146
    %p148 = scmp.ne.s32.totalorder %s134, %s135
    %p149 = scmp.eq.s32.totalorder %s17, 1
    %p150 = por %p148, %p149
    %p152 = scmp.ne.s32.totalorder %s135, %s151
    %p153 = scmp.eq.s32.totalorder %s17, 0
    %p154 = por %p152, %p153
    %p155 = scmp.le.s32.totalorder 1, %s11
    %p156 = scmp.lt.s32.totalorder %s11, 3
    %p157 = pnand %p155, %p156
    %p158 = pneg %p157
    // Predicated region
    $region9: #{mlp_forward.1} parent=5 // pred_check
      _
    $region10: #{mlp_forward.1} parent=5 // pred_check_branch
      %160 = sbr.rel (%p157) target = $region12
    $region11: #{mlp_forward.1} parent=5 // pred_region
      %s161 = ssub.s32 %s11, 1
      // Predicated region
      $region13: #{mlp_forward.1} parent=11 // pred_check
        %p162 = pneg %p58
      $region14: #{mlp_forward.1} parent=11 // pred_check_branch
        %164 = sbr.rel (%p162) target = $region16
      $region15: #{mlp_forward.1} parent=11 // pred_region
        _
      $region16: #{mlp_forward.1} parent=11 // pred_fallthru
        _
      // Predicated region
      $region17: #{mlp_forward.1} parent=11 // pred_check
        %p165 = pneg %p79
      $region18: #{mlp_forward.1} parent=11 // pred_check_branch
        %167 = sbr.rel (%p165) target = $region20
      $region19: #{mlp_forward.1} parent=11 // pred_region
        _
      $region20: #{mlp_forward.1} parent=11 // pred_fallthru
        _
      // Predicated region
      $region21: #{mlp_forward.1} parent=11 // pred_check
        %p168 = pneg %p100
      $region22: #{mlp_forward.1} parent=11 // pred_check_branch
        %170 = sbr.rel (%p168) target = $region24
      $region23: #{mlp_forward.1} parent=11 // pred_region
        _
      $region24: #{mlp_forward.1} parent=11 // pred_fallthru
        _
      // Predicated region
      $region25: #{mlp_forward.1} parent=11 // pred_check
        %p171 = pneg %p121
      $region26: #{mlp_forward.1} parent=11 // pred_check_branch
        %173 = sbr.rel (%p171) target = $region28
      $region27: #{mlp_forward.1} parent=11 // pred_region
        _
      $region28: #{mlp_forward.1} parent=11 // pred_fallthru
        _
    $region12: #{mlp_forward.1} parent=5 // pred_fallthru
      _
    %p174 = scmp.lt.s32.totalorder %s11, 2
    // Predicated region
    $region29: #{mlp_forward.1} parent=5 // pred_check
      %p175 = pneg %p174
    $region30: #{mlp_forward.1} parent=5 // pred_check_branch
      %177 = sbr.rel (%p175) target = $region32
    $region31: #{mlp_forward.1} parent=5 // pred_region
      // Predicated region
      $region33: #{mlp_forward.1} parent=31 // pred_check
        %p178 = pneg %p31
      $region34: #{mlp_forward.1} parent=31 // pred_check_branch
        %180 = sbr.rel (%p178) target = $region36
      $region35: #{mlp_forward.1} parent=31 // pred_region
        %s181 = smul.u32 4, %s11
        %p182 = scmp.lt.s32.totalorder %s181, 7
        %s183 = scalar_select %p182, %s181, 7
        %s184 = smul.addr %s183, 8
        %s185 = scalar_lea.vmem %s0, %s184
        %s186 = smul.u32 4, %s11
      $region36: #{mlp_forward.1} parent=31 // pred_fallthru
        _
    $region32: #{mlp_forward.1} parent=5 // pred_fallthru
      _
    %p187 = scmp.le.s32.totalorder 1, %s11
    %p188 = scmp.lt.s32.totalorder %s11, 3
    %p189 = pnand %p187, %p188
    %p190 = pneg %p189
    // Predicated region
    $region37: #{mlp_forward.1} parent=5 // pred_check
      _
    $region38: #{mlp_forward.1} parent=5 // pred_check_branch
      %192 = sbr.rel (%p189) target = $region40
    $region39: #{mlp_forward.1} parent=5 // pred_region
      %s193 = ssub.s32 %s11, 1
      %s194 = smul.u32 4, %s16
      %p195 = scmp.lt.s32.totalorder %s194, 7
      %s196 = scalar_select %p195, %s194, 7
      %s197 = smul.addr %s196, 8
      %s198 = scalar_lea.vmem %s0, %s197
      %p199 = pneg %p37
      %p200 = pneg %p34
      %p201 = pneg %p58
      %p202 = pneg %p55
      %p203 = pneg %p79
      %p204 = pneg %p76
      %p205 = pneg %p100
      %p206 = pneg %p97
      %p207 = pneg %p121
      %p208 = pneg %p118
      %p209 = pneg %p147
      %p210 = pneg %p144
      %s211 = smul.u32 4, %s16
      %p212 = scmp.lt.s32.totalorder %s211, 7
      %s213 = scalar_select %p212, %s211, 7
      %s214 = smul.addr %s213, 8
      %s215 = scalar_lea.vmem %s5, %s214
      %s216 = smul.u32 4, %s16
      %p217 = scmp.lt.s32.totalorder %s216, 7
      %s218 = scalar_select %p217, %s216, 7
      %s219 = smul.addr %s218, 8
      %s220 = scalar_lea.vmem %s0, %s219
      %s221 = smul.u32 4, %s16
      %s222 = smul.u32 4, %s16
      %p223 = scmp.lt.s32.totalorder %s222, 7
      %s224 = scalar_select %p223, %s222, 7
      %s225 = smul.addr %s224, 8
      %s226 = scalar_lea.vmem %s5, %s225
      %s227 = smul.u32 4, %s16
      %v228 = vld [vmem:[%s220] sm:$0xff]
      %v229 = vld [vmem:[%s220 + $0x8] sm:$0xff]
      %v230 = vld [vmem:[%s220 + $0x10] sm:$0xff]
      %v231 = vld [vmem:[%s220 + $0x18] sm:$0xff]
      %v232 = vld [vmem:[%s4] sm:$0x1]
      %v233 = vld [vmem:[%s4 + $0x1] sm:$0x1]
      %v234 = vld [vmem:[%s1] sm:$0xff]
      %v235 = vld [vmem:[%s1 + $0x8] sm:$0xff]
      %v236 = vld [vmem:[%s1 + $0x10] sm:$0xff]
      %v237 = vld [vmem:[%s1 + $0x18] sm:$0xff]
      %v238 = vld [vmem:[%s1 + $0x20] sm:$0xff]
      %v239 = vld [vmem:[%s1 + $0x28] sm:$0xff]
      %v240 = vld [vmem:[%s1 + $0x30] sm:$0xff]
      %v241 = vld [vmem:[%s1 + $0x38] sm:$0xff]
      %v242 = vld [vmem:[%s1 + $0x40] sm:$0xff]
      %v243 = vld [vmem:[%s1 + $0x48] sm:$0xff]
      %v244 = vld [vmem:[%s1 + $0x50] sm:$0xff]
      %v245 = vld [vmem:[%s1 + $0x58] sm:$0xff]
      %v246 = vld [vmem:[%s1 + $0x60] sm:$0xff]
      %v247 = vld [vmem:[%s1 + $0x68] sm:$0xff]
      %v248 = vld [vmem:[%s1 + $0x70] sm:$0xff]
      %v249 = vld [vmem:[%s1 + $0x78] sm:$0xff]
      %v250 = vlaneseq
      %v251 = vshrl.u32 %v250, 7
      %v252 = vsub.s32 0, %v251
      %v253 = vrot.slane %v232, %v252
      %254 = vmatprep.subr.mxu0 0.0
      %255 = vmatpush1.msra.mxu0 %v249
      %256 = vmatprep.subr.mxu0 0.0
      %257 = vmatpush1.msra.mxu0 %v248
      %258 = vmatprep.subr.mxu0 0.0
      %259 = vmatpush1.msra.mxu0 %v247
      %260 = vmatprep.subr.mxu0 0.0
      %261 = vmatpush1.msra.mxu0 %v246
      %262 = vmatprep.subr.mxu0 0.0
      %263 = vmatpush1.msra.mxu0 %v245
      %264 = vmatprep.subr.mxu0 0.0
      %265 = vmatpush1.msra.mxu0 %v244
      %266 = vmatprep.subr.mxu0 0.0
      %267 = vmatpush1.msra.mxu0 %v243
      %268 = vmatprep.subr.mxu0 0.0
      %269 = vmatpush1.msra.mxu0 %v242
      %270 = vmatprep.subr.mxu0 0.0
      %271 = vmatpush1.msra.mxu0 %v241
      %272 = vmatprep.subr.mxu0 0.0
      %273 = vmatpush1.msra.mxu0 %v240
      %274 = vmatprep.subr.mxu0 0.0
      %275 = vmatpush1.msra.mxu0 %v239
      %276 = vmatprep.subr.mxu0 0.0
      %277 = vmatpush1.msra.mxu0 %v238
      %278 = vmatprep.subr.mxu0 0.0
      %279 = vmatpush1.msra.mxu0 %v237
      %280 = vmatprep.subr.mxu0 0.0
      %281 = vmatpush1.msra.mxu0 %v236
      %282 = vmatprep.subr.mxu0 0.0
      %283 = vmatpush1.msra.mxu0 %v235
      %284 = vmatprep.subr.mxu0 0.0
      %285 = vmatpush1.msra.mxu0 %v234
      %286 = vmatprep.subr.mxu0 0.0
      %287 = vmatpush2.msra.mxu0 0.0
      %288 = vmatprep.subr.mxu0 0.0
      %289 = vmatpush2.msra.mxu0 0.0
      %290 = vmatprep.subr.mxu0 0.0
      %291 = vmatpush2.msra.mxu0 0.0
      %292 = vmatprep.subr.mxu0 0.0
      %293 = vmatpush2.msra.mxu0 0.0
      %294 = vmatprep.subr.mxu0 0.0
      %295 = vmatpush2.msra.mxu0 0.0
      %296 = vmatprep.subr.mxu0 0.0
      %297 = vmatpush2.msra.mxu0 0.0
      %298 = vmatprep.subr.mxu0 0.0
      %299 = vmatpush2.msra.mxu0 0.0
      %300 = vmatprep.subr.mxu0 0.0
      %301 = vmatpush2.msra.mxu0 0.0
      %302 = vmatprep.subr.mxu0 0.0
      %303 = vmatpush2.msra.mxu0 0.0
      %304 = vmatprep.subr.mxu0 0.0
      %305 = vmatpush2.msra.mxu0 0.0
      %306 = vmatprep.subr.mxu0 0.0
      %307 = vmatpush2.msra.mxu0 0.0
      %308 = vmatprep.subr.mxu0 0.0
      %309 = vmatpush2.msra.mxu0 0.0
      %310 = vmatprep.subr.mxu0 0.0
      %311 = vmatpush2.msra.mxu0 0.0
      %312 = vmatprep.subr.mxu0 0.0
      %313 = vmatpush2.msra.mxu0 0.0
      %314 = vmatprep.subr.mxu0 0.0
      %315 = vmatpush2.msra.mxu0 0.0
      %316 = vmatprep.subr.mxu0 0.0
      %317 = vmatpush2.msra.mxu0 0.0
      %318 = vmatprep.mubr.f32.mxu0 0.0
      %319 = vmatmul.mubr.f32.gmra.mxu0 %v228
      %v320 = vpop.f32.mrf.mxu0
      %v321 = vadd.f32 %v253, %v320
      %v322 = vpop.f32.mrf.mxu0
      %323 = vmatprep.mubr.f32.mxu0 0.0
      %324 = vmatmul.mubr.f32.gmra.mxu0 %v229
      %v325 = vpop.f32.mrf.mxu0
      %v326 = vadd.f32 %v253, %v325
      %v327 = vpop.f32.mrf.mxu0
      %328 = vmatprep.mubr.f32.mxu0 0.0
      %329 = vmatmul.mubr.f32.gmra.mxu0 %v230
      %v330 = vpop.f32.mrf.mxu0
      %v331 = vadd.f32 %v253, %v330
      %v332 = vpop.f32.mrf.mxu0
      %333 = vmatprep.mubr.f32.mxu0 0.0
      %334 = vmatmul.mubr.f32.gmra.mxu0 %v231
      %v335 = vpop.f32.mrf.mxu0
      %v336 = vadd.f32 %v253, %v335
      %v337 = vpop.f32.mrf.mxu0
      %338 = vdwg.mxu0
      %v339 = vtanh.pop %v321
      %v340 = vtanh.pop %v326
      %v341 = vtanh.pop %v331
      %v342 = vtanh.pop %v336
      %v343 = vld [vmem:[%s2] sm:$0xff]
      %v344 = vld [vmem:[%s2 + $0x8] sm:$0xff]
      %v345 = vld [vmem:[%s2 + $0x10] sm:$0xff]
      %v346 = vld [vmem:[%s2 + $0x18] sm:$0xff]
      %v347 = vld [vmem:[%s2 + $0x20] sm:$0xff]
      %v348 = vld [vmem:[%s2 + $0x28] sm:$0xff]
      %v349 = vld [vmem:[%s2 + $0x30] sm:$0xff]
      %v350 = vld [vmem:[%s2 + $0x38] sm:$0xff]
      %v351 = vld [vmem:[%s2 + $0x40] sm:$0xff]
      %v352 = vld [vmem:[%s2 + $0x48] sm:$0xff]
      %v353 = vld [vmem:[%s2 + $0x50] sm:$0xff]
      %v354 = vld [vmem:[%s2 + $0x58] sm:$0xff]
      %v355 = vld [vmem:[%s2 + $0x60] sm:$0xff]
      %v356 = vld [vmem:[%s2 + $0x68] sm:$0xff]
      %v357 = vld [vmem:[%s2 + $0x70] sm:$0xff]
      %v358 = vld [vmem:[%s2 + $0x78] sm:$0xff]
      %v359 = vlaneseq
      %v360 = vshrl.u32 %v359, 7
      %v361 = vsub.s32 0, %v360
      %v362 = vrot.slane %v233, %v361
      %363 = vmatprep.subr.mxu0 0.0
      %364 = vmatpush1.msra.mxu0 %v358
      %365 = vmatprep.subr.mxu0 0.0
      %366 = vmatpush1.msra.mxu0 %v357
      %367 = vmatprep.subr.mxu0 0.0
      %368 = vmatpush1.msra.mxu0 %v356
      %369 = vmatprep.subr.mxu0 0.0
      %370 = vmatpush1.msra.mxu0 %v355
      %371 = vmatprep.subr.mxu0 0.0
      %372 = vmatpush1.msra.mxu0 %v354
      %373 = vmatprep.subr.mxu0 0.0
      %374 = vmatpush1.msra.mxu0 %v353
      %375 = vmatprep.subr.mxu0 0.0
      %376 = vmatpush1.msra.mxu0 %v352
      %377 = vmatprep.subr.mxu0 0.0
      %378 = vmatpush1.msra.mxu0 %v351
      %379 = vmatprep.subr.mxu0 0.0
      %380 = vmatpush1.msra.mxu0 %v350
      %381 = vmatprep.subr.mxu0 0.0
      %382 = vmatpush1.msra.mxu0 %v349
      %383 = vmatprep.subr.mxu0 0.0
      %384 = vmatpush1.msra.mxu0 %v348
      %385 = vmatprep.subr.mxu0 0.0
      %386 = vmatpush1.msra.mxu0 %v347
      %387 = vmatprep.subr.mxu0 0.0
      %388 = vmatpush1.msra.mxu0 %v346
      %389 = vmatprep.subr.mxu0 0.0
      %390 = vmatpush1.msra.mxu0 %v345
      %391 = vmatprep.subr.mxu0 0.0
      %392 = vmatpush1.msra.mxu0 %v344
      %393 = vmatprep.subr.mxu0 0.0
      %394 = vmatpush1.msra.mxu0 %v343
      %395 = vmatprep.subr.mxu0 0.0
      %396 = vmatpush2.msra.mxu0 0.0
      %397 = vmatprep.subr.mxu0 0.0
      %398 = vmatpush2.msra.mxu0 0.0
      %399 = vmatprep.subr.mxu0 0.0
      %400 = vmatpush2.msra.mxu0 0.0
      %401 = vmatprep.subr.mxu0 0.0
      %402 = vmatpush2.msra.mxu0 0.0
      %403 = vmatprep.subr.mxu0 0.0
      %404 = vmatpush2.msra.mxu0 0.0
      %405 = vmatprep.subr.mxu0 0.0
      %406 = vmatpush2.msra.mxu0 0.0
      %407 = vmatprep.subr.mxu0 0.0
      %408 = vmatpush2.msra.mxu0 0.0
      %409 = vmatprep.subr.mxu0 0.0
      %410 = vmatpush2.msra.mxu0 0.0
      %411 = vmatprep.subr.mxu0 0.0
      %412 = vmatpush2.msra.mxu0 0.0
      %413 = vmatprep.subr.mxu0 0.0
      %414 = vmatpush2.msra.mxu0 0.0
      %415 = vmatprep.subr.mxu0 0.0
      %416 = vmatpush2.msra.mxu0 0.0
      %417 = vmatprep.subr.mxu0 0.0
      %418 = vmatpush2.msra.mxu0 0.0
      %419 = vmatprep.subr.mxu0 0.0
      %420 = vmatpush2.msra.mxu0 0.0
      %421 = vmatprep.subr.mxu0 0.0
      %422 = vmatpush2.msra.mxu0 0.0
      %423 = vmatprep.subr.mxu0 0.0
      %424 = vmatpush2.msra.mxu0 0.0
      %425 = vmatprep.subr.mxu0 0.0
      %426 = vmatpush2.msra.mxu0 0.0
      %427 = vmatprep.mubr.f32.mxu0 0.0
      %428 = vmatmul.mubr.f32.gmra.mxu0 %v339
      %v429 = vpop.f32.mrf.mxu0
      %v430 = vadd.f32 %v362, %v429
      %v431 = vpop.f32.mrf.mxu0
      %432 = vmatprep.mubr.f32.mxu0 0.0
      %433 = vmatmul.mubr.f32.gmra.mxu0 %v340
      %v434 = vpop.f32.mrf.mxu0
      %v435 = vadd.f32 %v362, %v434
      %v436 = vpop.f32.mrf.mxu0
      %437 = vmatprep.mubr.f32.mxu0 0.0
      %438 = vmatmul.mubr.f32.gmra.mxu0 %v341
      %v439 = vpop.f32.mrf.mxu0
      %v440 = vadd.f32 %v362, %v439
      %v441 = vpop.f32.mrf.mxu0
      %442 = vmatprep.mubr.f32.mxu0 0.0
      %443 = vmatmul.mubr.f32.gmra.mxu0 %v342
      %v444 = vpop.f32.mrf.mxu0
      %v445 = vadd.f32 %v362, %v444
      %v446 = vpop.f32.mrf.mxu0
      %447 = vdwg.mxu0
      %v448 = vtanh.pop %v430
      %v449 = vtanh.pop %v435
      %v450 = vtanh.pop %v440
      %v451 = vtanh.pop %v445
      %v452 = vld [vmem:[%s3] sm:$0xff]
      %v453 = vld [vmem:[%s3 + $0x8] sm:$0xff]
      %v454 = vld [vmem:[%s3 + $0x10] sm:$0xff]
      %v455 = vld [vmem:[%s3 + $0x18] sm:$0xff]
      %v456 = vld [vmem:[%s3 + $0x20] sm:$0xff]
      %v457 = vld [vmem:[%s3 + $0x28] sm:$0xff]
      %v458 = vld [vmem:[%s3 + $0x30] sm:$0xff]
      %v459 = vld [vmem:[%s3 + $0x38] sm:$0xff]
      %v460 = vld [vmem:[%s3 + $0x40] sm:$0xff]
      %v461 = vld [vmem:[%s3 + $0x48] sm:$0xff]
      %v462 = vld [vmem:[%s3 + $0x50] sm:$0xff]
      %v463 = vld [vmem:[%s3 + $0x58] sm:$0xff]
      %v464 = vld [vmem:[%s3 + $0x60] sm:$0xff]
      %v465 = vld [vmem:[%s3 + $0x68] sm:$0xff]
      %v466 = vld [vmem:[%s3 + $0x70] sm:$0xff]
      %v467 = vld [vmem:[%s3 + $0x78] sm:$0xff]
      %468 = vmatprep.subr.mxu0 0.0
      %469 = vmatpush1.msra.mxu0 %v467
      %470 = vmatprep.subr.mxu0 0.0
      %471 = vmatpush1.msra.mxu0 %v466
      %472 = vmatprep.subr.mxu0 0.0
      %473 = vmatpush1.msra.mxu0 %v465
      %474 = vmatprep.subr.mxu0 0.0
      %475 = vmatpush1.msra.mxu0 %v464
      %476 = vmatprep.subr.mxu0 0.0
      %477 = vmatpush1.msra.mxu0 %v463
      %478 = vmatprep.subr.mxu0 0.0
      %479 = vmatpush1.msra.mxu0 %v462
      %480 = vmatprep.subr.mxu0 0.0
      %481 = vmatpush1.msra.mxu0 %v461
      %482 = vmatprep.subr.mxu0 0.0
      %483 = vmatpush1.msra.mxu0 %v460
      %484 = vmatprep.subr.mxu0 0.0
      %485 = vmatpush1.msra.mxu0 %v459
      %486 = vmatprep.subr.mxu0 0.0
      %487 = vmatpush1.msra.mxu0 %v458
      %488 = vmatprep.subr.mxu0 0.0
      %489 = vmatpush1.msra.mxu0 %v457
      %490 = vmatprep.subr.mxu0 0.0
      %491 = vmatpush1.msra.mxu0 %v456
      %492 = vmatprep.subr.mxu0 0.0
      %493 = vmatpush1.msra.mxu0 %v455
      %494 = vmatprep.subr.mxu0 0.0
      %495 = vmatpush1.msra.mxu0 %v454
      %496 = vmatprep.subr.mxu0 0.0
      %497 = vmatpush1.msra.mxu0 %v453
      %498 = vmatprep.subr.mxu0 0.0
      %499 = vmatpush1.msra.mxu0 %v452
      %500 = vmatprep.subr.mxu0 0.0
      %501 = vmatpush2.msra.mxu0 0.0
      %502 = vmatprep.subr.mxu0 0.0
      %503 = vmatpush2.msra.mxu0 0.0
      %504 = vmatprep.subr.mxu0 0.0
      %505 = vmatpush2.msra.mxu0 0.0
      %506 = vmatprep.subr.mxu0 0.0
      %507 = vmatpush2.msra.mxu0 0.0
      %508 = vmatprep.subr.mxu0 0.0
      %509 = vmatpush2.msra.mxu0 0.0
      %510 = vmatprep.subr.mxu0 0.0
      %511 = vmatpush2.msra.mxu0 0.0
      %512 = vmatprep.subr.mxu0 0.0
      %513 = vmatpush2.msra.mxu0 0.0
      %514 = vmatprep.subr.mxu0 0.0
      %515 = vmatpush2.msra.mxu0 0.0
      %516 = vmatprep.subr.mxu0 0.0
      %517 = vmatpush2.msra.mxu0 0.0
      %518 = vmatprep.subr.mxu0 0.0
      %519 = vmatpush2.msra.mxu0 0.0
      %520 = vmatprep.subr.mxu0 0.0
      %521 = vmatpush2.msra.mxu0 0.0
      %522 = vmatprep.subr.mxu0 0.0
      %523 = vmatpush2.msra.mxu0 0.0
      %524 = vmatprep.subr.mxu0 0.0
      %525 = vmatpush2.msra.mxu0 0.0
      %526 = vmatprep.subr.mxu0 0.0
      %527 = vmatpush2.msra.mxu0 0.0
      %528 = vmatprep.subr.mxu0 0.0
      %529 = vmatpush2.msra.mxu0 0.0
      %530 = vmatprep.subr.mxu0 0.0
      %531 = vmatpush2.msra.mxu0 0.0
      %532 = vmatprep.mubr.f32.mxu0 0.0
      %533 = vmatmul.mubr.f32.gmra.mxu0 %v448
      %v534 = vpop.f32.mrf.mxu0
      %v535 = vadd.f32 0.0, %v534
      %v536 = vpop.f32.mrf.mxu0
      %537 = vmatprep.mubr.f32.mxu0 0.0
      %538 = vmatmul.mubr.f32.gmra.mxu0 %v449
      %v539 = vpop.f32.mrf.mxu0
      %v540 = vadd.f32 0.0, %v539
      %v541 = vpop.f32.mrf.mxu0
      %542 = vmatprep.mubr.f32.mxu0 0.0
      %543 = vmatmul.mubr.f32.gmra.mxu0 %v450
      %v544 = vpop.f32.mrf.mxu0
      %v545 = vadd.f32 0.0, %v544
      %v546 = vpop.f32.mrf.mxu0
      %547 = vmatprep.mubr.f32.mxu0 0.0
      %548 = vmatmul.mubr.f32.gmra.mxu0 %v451
      %v549 = vpop.f32.mrf.mxu0
      %v550 = vadd.f32 0.0, %v549
      %v551 = vpop.f32.mrf.mxu0
      %552 = vdwg.mxu0
      %553 = vst [vmem:[%s226] sm:$0xff] %v535
      %554 = vst [vmem:[%s226 + $0x8] sm:$0xff] %v540
      %555 = vst [vmem:[%s226 + $0x10] sm:$0xff] %v545
      %556 = vst [vmem:[%s226 + $0x18] sm:$0xff] %v550
      %s557 = smul.u32 4, %s16
      %p558 = scmp.lt.s32.totalorder %s557, 7
      %s559 = scalar_select %p558, %s557, 7
      %s560 = smul.addr %s559, 8
      %s561 = scalar_lea.vmem %s5, %s560
      // Predicated region
      $region41: #{mlp_forward.1} parent=39 // pred_check
        %p562 = pneg %p144
      $region42: #{mlp_forward.1} parent=39 // pred_check_branch
        %564 = sbr.rel (%p562) target = $region44
      $region43: #{mlp_forward.1} parent=39 // pred_region
        %s565 = smul.u32 4, %s16
      $region44: #{mlp_forward.1} parent=39 // pred_fallthru
        _
    $region40: #{mlp_forward.1} parent=5 // pred_fallthru
      _
    %p566 = scmp.le.s32.totalorder 2, %s11
    // Predicated region
    $region45: #{mlp_forward.1} parent=5 // pred_check
      %p567 = pneg %p566
    $region46: #{mlp_forward.1} parent=5 // pred_check_branch
      %569 = sbr.rel (%p567) target = $region48
    $region47: #{mlp_forward.1} parent=5 // pred_region
      %s570 = ssub.s32 %s11, 2
      // Predicated region
      $region49: #{mlp_forward.1} parent=47 // pred_check
        %p571 = pneg %p150
      $region50: #{mlp_forward.1} parent=47 // pred_check_branch
        %573 = sbr.rel (%p571) target = $region52
      $region51: #{mlp_forward.1} parent=47 // pred_region
        %s574 = smul.u32 4, %s17
        %p575 = scmp.lt.s32.totalorder %s574, 7
        %s576 = scalar_select %p575, %s574, 7
        %s577 = smul.addr %s576, 8
        %s578 = scalar_lea.vmem %s5, %s577
      $region52: #{mlp_forward.1} parent=47 // pred_fallthru
        _
    $region48: #{mlp_forward.1} parent=5 // pred_fallthru
      _
  $region6: #{mlp_forward.1} parent=0 // loop_footer
    %s15 = sadd.s32 1, %s11
  $region7: #{mlp_forward.1} parent=0 // loop_footer_branch
    %10 = sbr.rel target = $region3
  $region8: #{mlp_forward.1} parent=0 // loop_exit
    _

</llo_original>
